<compile_context>
chip_gen: v7x
topology: tpu7x:2x2x1
jax: 0.10.0
libtpu: 0.0.40
codegen_flags: <defaults>
</compile_context>

<pallas_src>
import jax
import jax.numpy as jnp
from jax import lax
from jax.experimental import pallas as pl
from jax.experimental.pallas import tpu as pltpu


# ----------------------------------------------------------------------------
# BlockSpec helper: single-invocation kernels, whole array resident in VMEM.
# ----------------------------------------------------------------------------
def _full_spec(shape):
    zeros = (0,) * len(shape)
    return pl.BlockSpec(shape, lambda *_: zeros)


# ----------------------------------------------------------------------------
# Kernel 1: backbone matmul (tiled grid, bf16 MXU operands, f32 accumulation,
#           intercept column written inside the kernel).
# ----------------------------------------------------------------------------
def linear_backbone(x_flat, w, b, *, intercept=True, tm=256, tk=512):
    """feat = x_flat @ w + b, optionally with a fused ones column appended."""
    n, d_in = x_flat.shape
    d_out = w.shape[1]
    d_feat = d_out + (1 if intercept else 0)

    # Tile sizes respecting the (8, 128) block rule; fall back to full extent
    # when a dim is small or not cleanly divisible.
    tm = n if (n <= tm or n % 8 != 0) else tm
    tk = d_in if (d_in <= tk or d_in % 128 != 0) else tk
    grid = (pl.cdiv(n, tm), pl.cdiv(d_in, tk))

    # bf16 operands are MXU-native on v5e/v6e/v7x and halve the DMA bytes;
    # accumulation stays in f32 via preferred_element_type.
    x_bf = x_flat.astype(jnp.bfloat16)
    w_bf = w.astype(jnp.bfloat16)

    def kernel(x_ref, w_ref, b_ref, o_ref, acc_ref):
        k = pl.program_id(1)

        @pl.when(k == 0)
        def _():
            acc_ref[...] = jnp.zeros_like(acc_ref)

        acc_ref[...] += jnp.dot(x_ref[...], w_ref[...],
                                preferred_element_type=jnp.float32)

        @pl.when(k == pl.num_programs(1) - 1)
        def _():
            feat = acc_ref[...] + b_ref[...]
            o_ref[:, :d_out] = feat
            if intercept:
                o_ref[:, d_out:d_feat] = jnp.ones(
                    (acc_ref.shape[0], 1), jnp.float32)

    return pl.pallas_call(
        kernel,
        out_shape=jax.ShapeDtypeStruct((n, d_feat), jnp.float32),
        grid_spec=pltpu.PrefetchScalarGridSpec(
            num_scalar_prefetch=0,
            grid=grid,
            in_specs=[pl.BlockSpec((tm, tk), lambda i, k: (i, k)),
                      pl.BlockSpec((tk, d_out), lambda i, k: (k, 0)),
                      pl.BlockSpec((1, d_out), lambda i, k: (0, 0))],
            out_specs=pl.BlockSpec((tm, d_feat), lambda i, k: (i, 0)),
            scratch_shapes=[pltpu.VMEM((tm, d_out), jnp.float32)]),
        compiler_params=pltpu.CompilerParams(
            # M rows are "parallel" so v7x's two TensorCores can split them.
            dimension_semantics=("parallel", "arbitrary")),
    )(x_bf, w_bf, b)


# ----------------------------------------------------------------------------
# Kernel 2: A = lam * I + X @ X^T   (hot path of least_square).
# ----------------------------------------------------------------------------
def regularized_gram(x, lam):
    n, d = x.shape
    lam = float(lam)

    # TODO(synk): for large n this whole-array-resident (n, n) output needs a
    # 2-D output grid / explicit vmem_limit_bytes (v7x has only 64 MiB VMEM).
    def kernel(x_ref, a_ref):
        xv = x_ref[...]
        g = lax.dot_general(xv, xv, (((1,), (1,)), ((), ())),
                            preferred_element_type=jnp.float32)        # X X^T
        row = lax.broadcasted_iota(jnp.int32, (n, n), 0)
        col = lax.broadcasted_iota(jnp.int32, (n, n), 1)
        a_ref[...] = g + jnp.where(row == col,
                                   jnp.float32(lam), jnp.float32(0.0))

    return pl.pallas_call(
        kernel,
        out_shape=jax.ShapeDtypeStruct((n, n), jnp.float32),
        in_specs=[_full_spec((n, d))],
        out_specs=_full_spec((n, n)),
    )(x)


# ----------------------------------------------------------------------------
# Kernel 3: fused tail — both least-square weight builds (X^T @ alpha) plus the
# query MSE, weight MSE and hinge-embedding losses, emitted as one (1, 128)
# lane-padded vector so no tiny (1,1) masked stores or extra dispatches remain.
# ----------------------------------------------------------------------------
def fused_tail_losses(combined_feat, alpha_combined, alpha_support,
                      y_query_onehot, embed_label, *, n_support,
                      margin=1.0, extra_reg=True):
    n_total, d_feat = combined_feat.shape
    n_ways = alpha_combined.shape[1]
    n_query = n_total - n_support
    margin = float(margin)

    def kernel(feat_ref, ac_ref, as_ref, yq_ref, lbl_ref, out_ref):
        feat = feat_ref[...]                                  # (n_total, d_feat)
        sup_feat = feat_ref[:n_support, :]                    # (n_sup,  d_feat)
        qry_feat = feat_ref[n_support:, :]                    # (n_qry,  d_feat)

        # weights = X^T @ alpha for both solves; stay in VMEM (never hit HBM).
        ideal_w = lax.dot_general(feat, ac_ref[...],
                                  (((0,), (0,)), ((), ())),
                                  preferred_element_type=jnp.float32)  # (d_feat, n_ways)
        sup_w = lax.dot_general(sup_feat, as_ref[...],
                                (((0,), (0,)), ((), ())),
                                preferred_element_type=jnp.float32)    # (d_feat, n_ways)

        # query MSE loss (predict_on_task).
        pred = jnp.dot(qry_feat, sup_w, preferred_element_type=jnp.float32)
        qdiff = pred - yq_ref[...]
        query_loss = jnp.sum(qdiff * qdiff) * (1.0 / (n_query * n_ways))

        if extra_reg:
            # weight MSE loss.
            wdiff = sup_w - ideal_w
            weight_loss = jnp.sum(wdiff * wdiff) * (1.0 / (d_feat * n_ways))

            # hinge-embedding loss over pairwise L2 distances (Gram trick).
            g = lax.dot_general(feat, feat, (((1,), (1,)), ((), ())),
                                preferred_element_type=jnp.float32)    # (n, n)
            row = lax.broadcasted_iota(jnp.int32, (n_total, n_total), 0)
            col = lax.broadcasted_iota(jnp.int32, (n_total, n_total), 1)
            # squared norms = diag(G); avoids the degenerate (1,d)x(d,n) matmul.
            gdiag = jnp.where(row == col, g, jnp.float32(0.0))
            sq_col = jnp.sum(gdiag, axis=1, keepdims=True)    # (n, 1)
            sq_row = jnp.sum(gdiag, axis=0, keepdims=True)    # (1, n)
            d2 = jnp.maximum(sq_col + sq_row - 2.0 * g, 0.0)
            # TODO(synk): sqrt has infinite gradient at d2 == 0 (the diagonal);
            # add an epsilon / mask the diagonal if this is ever differentiated.
            dist = jnp.sqrt(d2)
            lbl = lbl_ref[...]
            hinge = jnp.where(lbl > 0.0, dist,
                              jnp.maximum(margin - dist, 0.0))
            embed_loss = jnp.sum(hinge) * (1.0 / (n_total * n_total))
            full_loss = query_loss + embed_loss + weight_loss
        else:
            weight_loss = jnp.float32(0.0)
            embed_loss = jnp.float32(0.0)
            full_loss = query_loss

        lane = lax.broadcasted_iota(jnp.int32, (1, 128), 1)
        out_ref[...] = jnp.where(lane == 0, full_loss,
                       jnp.where(lane == 1, query_loss,
                       jnp.where(lane == 2, embed_loss,
                       jnp.where(lane == 3, weight_loss,
                                 jnp.float32(0.0)))))

    return pl.pallas_call(
        kernel,
        out_shape=jax.ShapeDtypeStruct((1, 128), jnp.float32),
        in_specs=[_full_spec((n_total, d_feat)),
                  _full_spec((n_total, n_ways)),
                  _full_spec((n_support, n_ways)),
                  _full_spec((n_query, n_ways)),
                  _full_spec((n_total, n_total))],
        out_specs=_full_spec((1, 128)),
    )(combined_feat, alpha_combined, alpha_support, y_query_onehot, embed_label)


# ----------------------------------------------------------------------------
# Glue (matches MetaLS.forward semantics)
# ----------------------------------------------------------------------------
def embed_mask(n_ways, n_shots):
    return jnp.kron(jnp.eye(n_ways, dtype=jnp.float32),
                    jnp.ones((n_shots, n_shots), jnp.float32))


def block_diag2(a, b):
    na, nb = a.shape[0], b.shape[0]
    top = jnp.concatenate([a, jnp.zeros((na, nb), a.dtype)], axis=1)
    bot = jnp.concatenate([jnp.zeros((nb, na), a.dtype), b], axis=1)
    return jnp.concatenate([top, bot], axis=0)


def meta_ls_forward(params, support_xs, support_ys, query_xs, query_ys,
                    *, n_ways, lam, intercept=True, extra_reg=True):
    n_sup = support_xs.shape[0]
    s_flat = support_xs.reshape(n_sup, -1).astype(jnp.float32)
    q_flat = query_xs.reshape(query_xs.shape[0], -1).astype(jnp.float32)
    combined_flat = jnp.concatenate([s_flat, q_flat], axis=0)
    combined_ys = jnp.concatenate([support_ys, query_ys], axis=0)

    # Pallas kernel 1: backbone matmul with the intercept column fused in.
    combined_feat = linear_backbone(combined_flat, params["w"], params["b"],
                                    intercept=intercept)

    # Pallas kernel 2: single Gram on the combined features; the support Gram
    # (lam already on the diagonal) is exactly its top-left block.
    A_combined = regularized_gram(combined_feat, lam)
    A_support = A_combined[:n_sup, :n_sup]

    y_comb_oh = jax.nn.one_hot(combined_ys, n_ways, dtype=jnp.float32)
    y_sup_oh = y_comb_oh[:n_sup]
    y_qry_oh = y_comb_oh[n_sup:]

    # TODO(synk): the dense SPD solve (torch.linalg.solve) has no Pallas/Mosaic
    # equivalent; it stays in plain JAX, but as a Cholesky solve (A is SPD:
    # lam*I + X X^T), which is cheaper and better conditioned than LU.
    c_comb = jax.scipy.linalg.cho_factor(A_combined)
    alpha_combined = jax.scipy.linalg.cho_solve(c_comb, y_comb_oh)
    c_sup = jax.scipy.linalg.cho_factor(A_support)
    alpha_support = jax.scipy.linalg.cho_solve(c_sup, y_sup_oh)

    # Pallas kernel 3: fused weights + losses; read the full loss from lane 0.
    losses = fused_tail_losses(combined_feat, alpha_combined, alpha_support,
                               y_qry_oh, params["embed_label"],
                               n_support=n_sup, margin=1.0,
                               extra_reg=extra_reg)
    return losses[0, 0]


# ----------------------------------------------------------------------------
if __name__ == "__main__":
    key = jax.random.PRNGKey(0)
    n_ways, n_shots, n_queries = 4, 2, 3
    lam = 1.0
    feat_dim = 32
    C, H, W = 4, 8, 8
    n_sup = n_ways * n_shots      # 8
    n_qry = n_ways * n_queries    # 12

    k1, k2, k3 = jax.random.split(key, 3)
    support_xs = jax.random.normal(k1, (n_sup, C, H, W), jnp.float32)
    query_xs = jax.random.normal(k2, (n_qry, C, H, W), jnp.float32)
    support_ys = jnp.repeat(jnp.arange(n_ways, dtype=jnp.int32), n_shots)
    query_ys = jnp.repeat(jnp.arange(n_ways, dtype=jnp.int32), n_queries)

    # deterministic synthetic backbone parameters (flatten -> linear, feat_dim)
    w = jax.random.normal(k3, (C * H * W, feat_dim), jnp.float32) * 0.05
    b = jnp.zeros((1, feat_dim), jnp.float32)

    # embed_label exactly as in MetaLS.__init__
    sup_embed = embed_mask(n_ways, n_shots)
    qry_embed = embed_mask(n_ways, n_queries)
    combined_embed = block_diag2(sup_embed, qry_embed)
    embed_label = combined_embed * 2.0 - jnp.ones_like(combined_embed)

    # parameters that exist in the module but are unused in forward()
    logit_scale = jnp.ones([], jnp.float32)           # noqa: F841
    logit_bias = jnp.zeros((1, n_ways), jnp.float32)  # noqa: F841

    params = dict(w=w, b=b, embed_label=embed_label)

    loss = meta_ls_forward(params, support_xs, support_ys, query_xs, query_ys,
                           n_ways=n_ways, lam=lam)
    jax.block_until_ready(loss)
    print("KERNEL_OK")
</pallas_src>

<mosaic_0001>
module attributes {stable_mosaic.version = 11 : i64} {
  func.func @kernel(%arg0: i32, %arg1: i32, %arg2: memref<20x256xbf16, #tpu.memory_space<vmem>>, %arg3: memref<256x32xbf16, #tpu.memory_space<vmem>>, %arg4: memref<1x32xf32, #tpu.memory_space<vmem>>, %arg5: memref<20x33xf32, #tpu.memory_space<vmem>>, %arg6: memref<20x32xf32, #tpu.memory_space<vmem>>) attributes {dimension_semantics = [#tpu.dimension_semantics<parallel>, #tpu.dimension_semantics<arbitrary>], iteration_bounds = array<i64: 1, 1>, scalar_prefetch = 0 : i64, scratch_operands = 1 : i64, tpu.core_type = #tpu.core_type<tc>, window_params = [{transform_indices = @transform_0, window_bounds = array<i64: 20, 256>}, {transform_indices = @transform_1, window_bounds = array<i64: 256, 32>}, {pipeline_mode = #tpu.pipeline_mode<synchronous>, transform_indices = @transform_2, window_bounds = array<i64: 1, 32>}, {transform_indices = @transform_3, window_bounds = array<i64: 20, 33>}]} {
    %c0_i32 = arith.constant 0 : i32
    %0 = arith.cmpi eq, %arg1, %c0_i32 : i32
    %1 = arith.extui %0 : i1 to i32
    %c0_i32_0 = arith.constant 0 : i32
    %2 = arith.cmpi ne, %1, %c0_i32_0 : i32
    scf.if %2 {
      %cst_10 = arith.constant 0.000000e+00 : f32
      %12 = vector.broadcast %cst_10 : f32 to vector<20x32xf32>
      %c0_11 = arith.constant 0 : index
      %c0_12 = arith.constant 0 : index
      %13 = vector.load %arg6[%c0_11, %c0_12] : memref<20x32xf32, #tpu.memory_space<vmem>>, vector<20x32xf32>
      tpu.vector_store %arg6[%c0_11, %c0_12], %12 {strides = array<i32>} : memref<20x32xf32, #tpu.memory_space<vmem>>, vector<20x32xf32>,
    } else {
    }
    %c0 = arith.constant 0 : index
    %c0_1 = arith.constant 0 : index
    %3 = vector.load %arg6[%c0, %c0_1] : memref<20x32xf32, #tpu.memory_space<vmem>>, vector<20x32xf32>
    %c0_2 = arith.constant 0 : index
    %c0_3 = arith.constant 0 : index
    %4 = vector.load %arg2[%c0_2, %c0_3] : memref<20x256xbf16, #tpu.memory_space<vmem>>, vector<20x256xbf16>
    %c0_4 = arith.constant 0 : index
    %c0_5 = arith.constant 0 : index
    %5 = vector.load %arg3[%c0_4, %c0_5] : memref<256x32xbf16, #tpu.memory_space<vmem>>, vector<256x32xbf16>
    %cst = arith.constant dense<0.000000e+00> : vector<20x32xf32>
    %6 = tpu.matmul %4, %5, %cst {dimension_numbers = #tpu.dot_dimension_numbers<[1], [0], [0], [1], [0, 0, 1, 1], [], []>} : vector<20x256xbf16>, vector<256x32xbf16>, vector<20x32xf32> -> vector<20x32xf32>
    %7 = arith.addf %3, %6 : vector<20x32xf32>
    %c0_6 = arith.constant 0 : index
    %c0_7 = arith.constant 0 : index
    %8 = vector.load %arg6[%c0_6, %c0_7] : memref<20x32xf32, #tpu.memory_space<vmem>>, vector<20x32xf32>
    tpu.vector_store %arg6[%c0_6, %c0_7], %7 {strides = array<i32>} : memref<20x32xf32, #tpu.memory_space<vmem>>, vector<20x32xf32>,
    %c0_i32_8 = arith.constant 0 : i32
    %9 = arith.cmpi eq, %arg1, %c0_i32_8 : i32
    %10 = arith.extui %9 : i1 to i32
    %c0_i32_9 = arith.constant 0 : i32
    %11 = arith.cmpi ne, %10, %c0_i32_9 : i32
    scf.if %11 {
      %c0_10 = arith.constant 0 : index
      %c0_11 = arith.constant 0 : index
      %12 = vector.load %arg6[%c0_10, %c0_11] : memref<20x32xf32, #tpu.memory_space<vmem>>, vector<20x32xf32>
      %c0_12 = arith.constant 0 : index
      %c0_13 = arith.constant 0 : index
      %13 = vector.load %arg4[%c0_12, %c0_13] : memref<1x32xf32, #tpu.memory_space<vmem>>, vector<1x32xf32>
      %14 = vector.broadcast %13 : vector<1x32xf32> to vector<20x32xf32>
      %15 = arith.addf %12, %14 : vector<20x32xf32>
      %c0_14 = arith.constant 0 : index
      %c0_15 = arith.constant 0 : index
      %16 = vector.load %arg5[%c0_14, %c0_15] : memref<20x33xf32, #tpu.memory_space<vmem>>, vector<20x32xf32>
      tpu.vector_store %arg5[%c0_14, %c0_15], %15 {strides = array<i32>} : memref<20x33xf32, #tpu.memory_space<vmem>>, vector<20x32xf32>,
      %cst_16 = arith.constant 1.000000e+00 : f32
      %17 = vector.broadcast %cst_16 : f32 to vector<20x1xf32>
      %c0_17 = arith.constant 0 : index
      %c32 = arith.constant 32 : index
      %18 = vector.load %arg5[%c0_17, %c32] : memref<20x33xf32, #tpu.memory_space<vmem>>, vector<20x1xf32>
      tpu.vector_store %arg5[%c0_17, %c32], %17 {strides = array<i32>} : memref<20x33xf32, #tpu.memory_space<vmem>>, vector<20x1xf32>,
    } else {
    }
    return
  }
  func.func @transform_0(%arg0: i32, %arg1: i32) -> (i32, i32) {
    %c0_i32 = arith.constant 0 : i32
    return %arg0, %arg1 : i32, i32
  }
  func.func @transform_1(%arg0: i32, %arg1: i32) -> (i32, i32) {
    %c0_i32 = arith.constant 0 : i32
    %c0_i32_0 = arith.constant 0 : i32
    return %arg1, %c0_i32 : i32, i32
  }
  func.func @transform_2(%arg0: i32, %arg1: i32) -> (i32, i32) {
    %c0_i32 = arith.constant 0 : i32
    %c0_i32_0 = arith.constant 0 : i32
    %c0_i32_1 = arith.constant 0 : i32
    return %c0_i32, %c0_i32_0 : i32, i32
  }
  func.func @transform_3(%arg0: i32, %arg1: i32) -> (i32, i32) {
    %c0_i32 = arith.constant 0 : i32
    %c0_i32_0 = arith.constant 0 : i32
    return %arg0, %c0_i32 : i32, i32
  }
}

</mosaic_0001>

<llo_original>
// kernel: tpu_custom_call.1
$region0: #{tpu_custom_call.1}
  #allocation0 [shape = 'u32[]', space=smem, size = 0x4, offset = 0x4, fixed_abs, tag = 'smem constant byte address 0x4 - core index']
  #allocation1 [shape = 'u32[144,128]{1,0:T(1,128)}', space=vmem, size = 0x12000, scoped, tag = 'internal scratch']
  #allocation2 [shape = 'f32[20,32]{1,0:T(8,128)}', space=vmem, size = 0x3000, scoped, tag = 'scratch operand']
  %s0 = inlined_call_operand.vmem [shape: bf16[20,256], index: 0, kind: input, shape index: {}]
  %s1 = inlined_call_operand.vmem [shape: bf16[256,32], index: 1, kind: input, shape index: {}]
  %s2 = inlined_call_operand.vmem [shape: f32[1,32], index: 2, kind: input, shape index: {}]
  %s3 = inlined_call_operand.hbm [shape: f32[20,33], index: 3, kind: output, shape index: {}]
  %s4 = sld [smem:[#allocation0]]
  $region30: #{tpu_custom_call.1} parent=0
    _
  %s6 = ssub.s32 1, %s4
  %s7 = scalar_select 0, %s6, %s4
  $region1: #{tpu_custom_call.1} parent=0
    #allocation3 [shape = 'u8[12288]{0}', space=vmem, size = 0x3000, scoped, tag = 'output window, operand 0, single buffered']
    #allocation4 [shape = 's32[1]{0}', space=sflag, size = 0x4, scoped, tag = 'scoped memory for tpu_custom_call.1']
    %8 = vsyncpa [#allocation4], 0
    // Predicated region
    $region2: #{tpu_custom_call.1} parent=1 // pred_check
      _
    $region3: #{tpu_custom_call.1} parent=1 // pred_check_branch
      %10 = sbr.rel (0) target = $region5
    $region4: #{tpu_custom_call.1} parent=1 // pred_region
      _
    $region5: #{tpu_custom_call.1} parent=1 // pred_fallthru
      _
    // Predicated region
    $region6: #{tpu_custom_call.1} parent=1 // pred_check
      _
    $region7: #{tpu_custom_call.1} parent=1 // pred_check_branch
      %12 = sbr.rel (0) target = $region9
    $region8: #{tpu_custom_call.1} parent=1 // pred_region
      _
    $region9: #{tpu_custom_call.1} parent=1 // pred_fallthru
      _
    // Predicated region
    $region10: #{tpu_custom_call.1} parent=1 // pred_check
      _
    $region11: #{tpu_custom_call.1} parent=1 // pred_check_branch
      %14 = sbr.rel (0) target = $region13
    $region12: #{tpu_custom_call.1} parent=1 // pred_region
      _
    $region13: #{tpu_custom_call.1} parent=1 // pred_fallthru
      _
    %p16 = scmp.eq.s32.totalorder 0, 0
    // Predicated region
    $region14: #{tpu_custom_call.1} parent=1 // pred_check
      %p17 = pneg %p16
    $region15: #{tpu_custom_call.1} parent=1 // pred_check_branch
      %19 = sbr.rel (%p17) target = $region17
    $region16: #{tpu_custom_call.1} parent=1 // pred_region
      %vm20 = vcmask 261120
      %21 = vst.msk [vmem:[#allocation2] sm:$0xff] %vm20, 0.0
      %22 = vst.msk [vmem:[#allocation2 + $0x8] sm:$0xff] %vm20, 0.0
      %vm23 = vcmask 257024
      %24 = vst.msk [vmem:[#allocation2 + $0x10] sm:$0xf] %vm23, 0.0
    $region17: #{tpu_custom_call.1} parent=1 // pred_fallthru
      _
    %v25 = vld [vmem:[#allocation2] sm:$0xff]
    %v26 = vld [vmem:[#allocation2 + $0x8] sm:$0xff]
    %v27 = vld [vmem:[#allocation2 + $0x10] sm:$0xf]
    %v28 = vld [vmem:[%s0] sm:$0xff]
    %v29 = vld [vmem:[%s0 + $0x8] sm:$0xff]
    %v30 = vld [vmem:[%s0 + $0x10] sm:$0x33]
    %v31 = vld [vmem:[%s1] sm:$0xf]
    %v32 = vld [vmem:[%s1 + $0x4] sm:$0xf]
    %v33 = vld [vmem:[%s1 + $0x8] sm:$0xf]
    %v34 = vld [vmem:[%s1 + $0xc] sm:$0xf]
    %v35 = vld [vmem:[%s1 + $0x10] sm:$0xf]
    %v36 = vld [vmem:[%s1 + $0x14] sm:$0xf]
    %v37 = vld [vmem:[%s1 + $0x18] sm:$0xf]
    %v38 = vld [vmem:[%s1 + $0x1c] sm:$0xf]
    %v39 = vld [vmem:[%s1 + $0x20] sm:$0xf]
    %v40 = vld [vmem:[%s1 + $0x24] sm:$0xf]
    %v41 = vld [vmem:[%s1 + $0x28] sm:$0xf]
    %v42 = vld [vmem:[%s1 + $0x2c] sm:$0xf]
    %v43 = vld [vmem:[%s1 + $0x30] sm:$0xf]
    %v44 = vld [vmem:[%s1 + $0x34] sm:$0xf]
    %v45 = vld [vmem:[%s1 + $0x38] sm:$0xf]
    %v46 = vld [vmem:[%s1 + $0x3c] sm:$0xf]
    %v47 = vld [vmem:[%s1 + $0x40] sm:$0xf]
    %v48 = vld [vmem:[%s1 + $0x44] sm:$0xf]
    %v49 = vld [vmem:[%s1 + $0x48] sm:$0xf]
    %v50 = vld [vmem:[%s1 + $0x4c] sm:$0xf]
    %v51 = vld [vmem:[%s1 + $0x50] sm:$0xf]
    %v52 = vld [vmem:[%s1 + $0x54] sm:$0xf]
    %v53 = vld [vmem:[%s1 + $0x58] sm:$0xf]
    %v54 = vld [vmem:[%s1 + $0x5c] sm:$0xf]
    %v55 = vld [vmem:[%s1 + $0x60] sm:$0xf]
    %v56 = vld [vmem:[%s1 + $0x64] sm:$0xf]
    %v57 = vld [vmem:[%s1 + $0x68] sm:$0xf]
    %v58 = vld [vmem:[%s1 + $0x6c] sm:$0xf]
    %v59 = vld [vmem:[%s1 + $0x70] sm:$0xf]
    %v60 = vld [vmem:[%s1 + $0x74] sm:$0xf]
    %v61 = vld [vmem:[%s1 + $0x78] sm:$0xf]
    %v62 = vld [vmem:[%s1 + $0x7c] sm:$0xf]
    %v66 = vunpack.c.l.b16 %v28
    %v67 = vunpack.c.h.b16 %v28
    %v68 = vunpack.c.l.b16 %v29
    %v69 = vunpack.c.h.b16 %v29
    %v70 = vunpack.c.l.b16 %v30
    %v71 = vunpack.c.h.b16 %v30
    %v72 = vpack.c.b16 %v68, %v66
    %v73 = vpack.c.b16 %v69, %v67
    %v74 = vpack.c.b16 %v70, %v70
    %v75 = vpack.c.b16 %v71, %v71
    %v112 = vunpack.c.l.b16 %v31
    %v113 = vunpack.c.l.b16 %v32
    %v114 = vunpack.c.l.b16 %v33
    %v115 = vunpack.c.l.b16 %v34
    %v116 = vunpack.c.l.b16 %v35
    %v117 = vunpack.c.l.b16 %v36
    %v118 = vunpack.c.l.b16 %v37
    %v119 = vunpack.c.l.b16 %v38
    %v120 = vunpack.c.l.b16 %v39
    %v121 = vunpack.c.l.b16 %v40
    %v122 = vunpack.c.l.b16 %v41
    %v123 = vunpack.c.l.b16 %v42
    %v124 = vunpack.c.l.b16 %v43
    %v125 = vunpack.c.l.b16 %v44
    %v126 = vunpack.c.l.b16 %v45
    %v127 = vunpack.c.l.b16 %v46
    %v128 = vunpack.c.l.b16 %v47
    %v129 = vunpack.c.l.b16 %v48
    %v130 = vunpack.c.l.b16 %v49
    %v131 = vunpack.c.l.b16 %v50
    %v132 = vunpack.c.l.b16 %v51
    %v133 = vunpack.c.l.b16 %v52
    %v134 = vunpack.c.l.b16 %v53
    %v135 = vunpack.c.l.b16 %v54
    %v136 = vunpack.c.l.b16 %v55
    %v137 = vunpack.c.l.b16 %v56
    %v138 = vunpack.c.l.b16 %v57
    %v139 = vunpack.c.l.b16 %v58
    %v140 = vunpack.c.l.b16 %v59
    %v141 = vunpack.c.l.b16 %v60
    %v142 = vunpack.c.l.b16 %v61
    %v143 = vunpack.c.l.b16 %v62
    %v144 = vpack.c.b16 %v113, %v112
    %v145 = vpack.c.b16 %v115, %v114
    %v146 = vpack.c.b16 %v117, %v116
    %v147 = vpack.c.b16 %v119, %v118
    %v148 = vpack.c.b16 %v121, %v120
    %v149 = vpack.c.b16 %v123, %v122
    %v150 = vpack.c.b16 %v125, %v124
    %v151 = vpack.c.b16 %v127, %v126
    %v152 = vpack.c.b16 %v129, %v128
    %v153 = vpack.c.b16 %v131, %v130
    %v154 = vpack.c.b16 %v133, %v132
    %v155 = vpack.c.b16 %v135, %v134
    %v156 = vpack.c.b16 %v137, %v136
    %v157 = vpack.c.b16 %v139, %v138
    %v158 = vpack.c.b16 %v141, %v140
    %v159 = vpack.c.b16 %v143, %v142
    %176 = vmatprep.subr.bf16.mxu0 0
    %177 = vmatpush1.bf16.msra.mxu0 %v144
    %178 = vmatprep.subr.bf16.mxu0 0
    %179 = vmatpush1.bf16.msra.mxu0 %v145
    %180 = vmatprep.subr.bf16.mxu0 0
    %181 = vmatpush1.bf16.msra.mxu0 %v146
    %182 = vmatprep.subr.bf16.mxu0 0
    %183 = vmatpush1.bf16.msra.mxu0 %v147
    %184 = vmatprep.subr.bf16.mxu0 0
    %185 = vmatpush1.bf16.msra.mxu0 %v148
    %186 = vmatprep.subr.bf16.mxu0 0
    %187 = vmatpush1.bf16.msra.mxu0 %v149
    %188 = vmatprep.subr.bf16.mxu0 0
    %189 = vmatpush1.bf16.msra.mxu0 %v150
    %190 = vmatprep.subr.bf16.mxu0 0
    %191 = vmatpush1.bf16.msra.mxu0 %v151
    %192 = vmatprep.subr.bf16.mxu0 0
    %193 = vmatpush1.bf16.msra.mxu0 %v152
    %194 = vmatprep.subr.bf16.mxu0 0
    %195 = vmatpush1.bf16.msra.mxu0 %v153
    %196 = vmatprep.subr.bf16.mxu0 0
    %197 = vmatpush1.bf16.msra.mxu0 %v154
    %198 = vmatprep.subr.bf16.mxu0 0
    %199 = vmatpush1.bf16.msra.mxu0 %v155
    %200 = vmatprep.subr.bf16.mxu0 0
    %201 = vmatpush1.bf16.msra.mxu0 %v156
    %202 = vmatprep.subr.bf16.mxu0 0
    %203 = vmatpush1.bf16.msra.mxu0 %v157
    %204 = vmatprep.subr.bf16.mxu0 0
    %205 = vmatpush1.bf16.msra.mxu0 %v158
    %206 = vmatprep.subr.bf16.mxu0 0
    %207 = vmatpush1.bf16.msra.mxu0 %v159
    %208 = vmatprep.mubr.bf16.mxu0 %v73
    %209 = vmatmul.mubr.bf16.gmra.mrb[0].mxu0 %v72
    %v210 = vpop.f32.mrb[0].mxu0
    %v211 = vadd.f32 0.0, %v210
    %v212 = vpop.f32.mrb[0].mxu0
    %v213 = vpop.f32.mrb[0].mxu0
    %v214 = vadd.f32 0.0, %v213
    %v215 = vpop.f32.mrb[0].mxu0
    %216 = vmatprep.mubr.bf16.mxu0 %v75
    %217 = vmatmul.mubr.bf16.gmra.mrb[0].mxu0 %v74
    %v218 = vpop.f32.mrb[0].mxu0
    %v219 = vadd.f32 0.0, %v218
    %v220 = vpop.f32.mrb[0].mxu0
    %v221 = vpop.f32.mrb[0].mxu0
    %v222 = vpop.f32.mrb[0].mxu0
    %223 = vdwg.mxu0
    %v224 = vadd.f32 %v25, %v211
    %v225 = vadd.f32 %v26, %v214
    %v226 = vadd.f32 %v27, %v219
    %vm227 = vcmask 261120
    %228 = vst.msk [vmem:[#allocation2] sm:$0xff] %vm227, %v224
    %229 = vst.msk [vmem:[#allocation2 + $0x8] sm:$0xff] %vm227, %v225
    %vm230 = vcmask 257024
    %231 = vst.msk [vmem:[#allocation2 + $0x10] sm:$0xf] %vm230, %v226
    // Predicated region
    $region18: #{tpu_custom_call.1} parent=1 // pred_check
      %p232 = pneg %p16
    $region19: #{tpu_custom_call.1} parent=1 // pred_check_branch
      %234 = sbr.rel (%p232) target = $region21
    $region20: #{tpu_custom_call.1} parent=1 // pred_region
      %v235 = vld [vmem:[#allocation2] sm:$0xff]
      %v236 = vld [vmem:[#allocation2 + $0x8] sm:$0xff]
      %v237 = vld [vmem:[#allocation2 + $0x10] sm:$0xf]
      %v238 = vld [vmem:[%s2] sm:$0x1]
      %v240 = vlaneseq
      %v241 = vshrl.u32 %v240, 7
      %v242 = vsub.s32 0, %v241
      %v243 = vrot.slane %v238, %v242
      %v245 = vadd.f32 %v235, %v243
      %v246 = vadd.f32 %v236, %v243
      %v247 = vadd.f32 %v237, %v243
      %248 = vst.msk [vmem:[#allocation3] sm:$0xff] %vm227, %v245
      %249 = vst.msk [vmem:[#allocation3 + $0x8] sm:$0xff] %vm227, %v246
      %250 = vst.msk [vmem:[#allocation3 + $0x10] sm:$0xf] %vm230, %v247
      %vm251 = vcmask 269568
      %252 = vst.msk [vmem:[#allocation3] sm:$0xff] %vm251, 1.0
      %253 = vst.msk [vmem:[#allocation3 + $0x8] sm:$0xff] %vm251, 1.0
      %vm254 = vcmask 265472
      %255 = vst.msk [vmem:[#allocation3 + $0x10] sm:$0xf] %vm254, 1.0
    $region21: #{tpu_custom_call.1} parent=1 // pred_fallthru
      _
    // Predicated region
    $region22: #{tpu_custom_call.1} parent=1 // pred_check
      _
    $region23: #{tpu_custom_call.1} parent=1 // pred_check_branch
      %257 = sbr.rel (0) target = $region25
    $region24: #{tpu_custom_call.1} parent=1 // pred_region
      %s259 = ssub.s32 384, 384
      %260 = vsyncadd [#allocation4], %s259
      %s261 = sshll.u32 [#allocation3], 4
      %s262 = int_to_ptr.vmem [resolvable:$true] %s261
      %267 = dma.vmem_to_hbm [thread:$0]  %s262, 384, %s3, [#allocation4], 128, 128, 8
    $region25: #{tpu_custom_call.1} parent=1 // pred_fallthru
      _
    // Predicated region
    $region26: #{tpu_custom_call.1} parent=1 // pred_check
      _
    $region27: #{tpu_custom_call.1} parent=1 // pred_check_branch
      %269 = sbr.rel (0) target = $region29
    $region28: #{tpu_custom_call.1} parent=1 // pred_region
      %270 = dma.done [#allocation4], 384
    $region29: #{tpu_custom_call.1} parent=1 // pred_fallthru
      _
    %271 = vsyncpa [#allocation4], 1

</llo_original>
